<compile_context>
chip_gen: v6e
topology: v6e:2x2x1
jax: 0.10.0
libtpu: 0.0.40
codegen_flags: <defaults>
</compile_context>

<pallas_src>
import jax
import jax.numpy as jnp
import numpy as np
from jax import lax
from jax.experimental import pallas as pl
from jax.experimental.pallas import tpu as pltpu


def _make_kernel(H, W):
    HW = H * W

    def kernel(x_ref, w1_ref, bias_ref, w2_ref, edge_ref, out_ref,
               xflat_ref, pcol_ref):
        """One grid step = one batch element.

        x_ref    : (1, Cin, H*W)         NCHW image, spatial flattened (lane-dense)
        w1_ref   : (Cmid, 9*Cin)         3x3 weights, BN scale folded, tap-major K
        bias_ref : (Cmid, 1)             folded BN bias
        w2_ref   : (Ncls, Cmid)          1x1 conv weights
        edge_ref : (2, H*W)              keep-masks for left/right row-wrap columns
        out_ref  : (1, Ncls, H*W)        NCHW output, spatial flattened
        xflat_ref: (Cin, H*W + 2*(W+1))  zero-padded flat image (VMEM scratch)
        pcol_ref : (9*Cin, H*W)          im2col patch matrix (VMEM scratch)
        """
        Cin = x_ref.shape[1]

        # In-kernel zero padding (no jnp.pad / HBM round trip in the wrapper).
        xflat_ref[...] = jnp.zeros_like(xflat_ref)
        xflat_ref[:, W + 1:W + 1 + HW] = x_ref[0]

        # Keep-masks: a flat shift by +/-1 wraps column w=0 / w=W-1 into the
        # neighbouring row; those positions must read the zero padding instead.
        left_keep = edge_ref[0:1, :]    # zero at w == 0     (for dx == 0 taps)
        right_keep = edge_ref[1:2, :]   # zero at w == W - 1 (for dx == 2 taps)

        # im2col: each of the 9 taps is a constant-offset slice of the padded
        # flat image.  Assemble the (9*Cin, H*W) contraction operand in VMEM.
        for dy in range(3):
            for dx in range(3):
                off = dy * W + dx
                patch = xflat_ref[:, off:off + HW]           # (Cin, H*W)
                if dx == 0:
                    patch = patch * left_keep
                elif dx == 2:
                    patch = patch * right_keep
                t = dy * 3 + dx
                pcol_ref[t * Cin:(t + 1) * Cin, :] = patch

        # 3x3 conv (+ folded BN scale) as one fat MXU matmul, then bias + ReLU.
        acc = jnp.dot(w1_ref[...], pcol_ref[...],
                      preferred_element_type=jnp.float32)    # (Cmid, H*W)
        h = jnp.maximum(acc + bias_ref[...], 0.0)

        # 1x1 conv as a second matmul; lane-dense (Ncls, H*W) store.
        y = jnp.dot(w2_ref[...], h.astype(w2_ref.dtype),
                    preferred_element_type=jnp.float32)      # (Ncls, H*W)
        out_ref[0] = y.astype(out_ref.dtype)

    return kernel


@jax.jit
def bisenet_output(x_nchw, w1_oihw, w2_oihw, bn_gamma, bn_beta, bn_mean, bn_var,
                   eps=1e-5):
    """BiSeNetOutput forward. x_nchw: (N, Cin, H, W) -> (N, Ncls, H, W)."""
    N, Cin, H, W = x_nchw.shape
    Cmid = w1_oihw.shape[0]
    Ncls = w2_oihw.shape[0]
    HW = H * W

    # Fold inference-form BN into the conv1 weights (scale) + a bias vector.
    inv_std = lax.rsqrt(bn_var + eps)
    scale = bn_gamma * inv_std                                   # (Cmid,)
    bias = (bn_beta - bn_mean * scale).reshape(Cmid, 1)          # (Cmid, 1)

    # (Cmid, Cin, 3, 3) -> (Cmid, 3, 3, Cin) -> (Cmid, 9*Cin); column order
    # (dy*3 + dx major, ci minor) matches the im2col row order in the kernel.
    w1_cat = (jnp.transpose(w1_oihw * scale[:, None, None, None], (0, 2, 3, 1))
              .reshape(Cmid, 9 * Cin))
    w2 = w2_oihw[:, :, 0, 0]                                     # (Ncls, Cmid)

    # Row-wrap keep-masks (tiny, computed once per call).
    col = jnp.arange(HW, dtype=jnp.int32) % W
    edge_keep = jnp.stack([
        jnp.where(col == 0, 0.0, 1.0),
        jnp.where(col == W - 1, 0.0, 1.0),
    ]).astype(x_nchw.dtype)                                      # (2, H*W)

    # Free contiguous trailing-dim reshape (no transpose / pad HBM passes).
    x_flat = x_nchw.reshape(N, Cin, HW)

    itemsize = jnp.dtype(x_nchw.dtype).itemsize
    cost = pl.CostEstimate(
        flops=2 * N * HW * (9 * Cin * Cmid + Cmid * Ncls),
        transcendentals=0,
        bytes_accessed=int((x_flat.size + w1_cat.size + w2.size + bias.size
                            + edge_keep.size + N * Ncls * HW) * itemsize))

    out_flat = pl.pallas_call(
        _make_kernel(H, W),
        out_shape=jax.ShapeDtypeStruct((N, Ncls, HW), x_nchw.dtype),
        grid_spec=pltpu.PrefetchScalarGridSpec(
            num_scalar_prefetch=0,
            grid=(N,),
            in_specs=[
                pl.BlockSpec((1, Cin, HW), lambda n: (n, 0, 0)),
                pl.BlockSpec((Cmid, 9 * Cin), lambda n: (0, 0)),
                pl.BlockSpec((Cmid, 1), lambda n: (0, 0)),
                pl.BlockSpec((Ncls, Cmid), lambda n: (0, 0)),
                pl.BlockSpec((2, HW), lambda n: (0, 0)),
            ],
            out_specs=pl.BlockSpec((1, Ncls, HW), lambda n: (n, 0, 0)),
            scratch_shapes=[
                pltpu.VMEM((Cin, HW + 2 * (W + 1)), x_nchw.dtype),
                pltpu.VMEM((9 * Cin, HW), x_nchw.dtype),
            ],
        ),
        compiler_params=pltpu.CompilerParams(
            dimension_semantics=("parallel",),
            vmem_limit_bytes=32 * 1024 * 1024,
        ),
        cost_estimate=cost,
    )(x_flat, w1_cat, bias, w2, edge_keep)

    # Contiguous trailing-dim split back to NCHW.
    return out_flat.reshape(N, Ncls, H, W)


def _reference(x_nchw, w1_oihw, w2_oihw, bn_gamma, bn_beta, bn_mean, bn_var,
               eps=1e-5):
    """Pure-JAX reference (lax.conv) for correctness checking."""
    y = lax.conv_general_dilated(x_nchw, w1_oihw, window_strides=(1, 1),
                                 padding=((1, 1), (1, 1)),
                                 dimension_numbers=("NCHW", "OIHW", "NCHW"))
    scale = (bn_gamma / jnp.sqrt(bn_var + eps)).reshape(1, -1, 1, 1)
    bias = (bn_beta - bn_mean * bn_gamma / jnp.sqrt(bn_var + eps)).reshape(1, -1, 1, 1)
    y = jnp.maximum(y * scale + bias, 0.0)
    return lax.conv_general_dilated(y, w2_oihw, window_strides=(1, 1),
                                    padding=((0, 0), (0, 0)),
                                    dimension_numbers=("NCHW", "OIHW", "NCHW"))


if __name__ == "__main__":
    # Small shapes: batch=2, in_chan=4, mid_chan=32, n_classes=8, spatial=16.
    N, Cin, Cmid, Ncls, H, W = 2, 4, 32, 8, 16, 16

    key = jax.random.PRNGKey(0)
    kx, k1, k2 = jax.random.split(key, 3)

    x = jax.random.normal(kx, (N, Cin, H, W), dtype=jnp.float32)

    # kaiming_normal_(a=1): gain = sqrt(2/(1+1)) = 1, std = gain/sqrt(fan_in)
    std1 = 1.0 / np.sqrt(Cin * 3 * 3)
    std2 = 1.0 / np.sqrt(Cmid * 1 * 1)
    w1 = jax.random.normal(k1, (Cmid, Cin, 3, 3), dtype=jnp.float32) * std1
    w2 = jax.random.normal(k2, (Ncls, Cmid, 1, 1), dtype=jnp.float32) * std2

    # BatchNorm2d defaults (inference form): gamma=1, beta=0, mean=0, var=1.
    gamma = jnp.ones((Cmid,), jnp.float32)
    beta = jnp.zeros((Cmid,), jnp.float32)
    mean = jnp.zeros((Cmid,), jnp.float32)
    var = jnp.ones((Cmid,), jnp.float32)

    out = jax.block_until_ready(bisenet_output(x, w1, w2, gamma, beta, mean, var))
    ref = jax.block_until_ready(_reference(x, w1, w2, gamma, beta, mean, var))

    assert out.shape == (N, Ncls, H, W), out.shape
    np.testing.assert_allclose(np.asarray(out), np.asarray(ref),
                               rtol=1e-4, atol=1e-4)

    print("KERNEL_OK")
</pallas_src>

<mosaic_0001>
module attributes {stable_mosaic.version = 11 : i64} {
  func.func @kernel(%arg0: i32, %arg1: memref<1x4x256xf32, #tpu.memory_space<vmem>>, %arg2: memref<32x36xf32, #tpu.memory_space<vmem>>, %arg3: memref<32x1xf32, #tpu.memory_space<vmem>>, %arg4: memref<8x32xf32, #tpu.memory_space<vmem>>, %arg5: memref<2x256xf32, #tpu.memory_space<vmem>>, %arg6: memref<1x8x256xf32, #tpu.memory_space<vmem>>, %arg7: memref<4x290xf32, #tpu.memory_space<vmem>>, %arg8: memref<36x256xf32, #tpu.memory_space<vmem>>) attributes {dimension_semantics = [#tpu.dimension_semantics<parallel>], iteration_bounds = array<i64: 2>, scalar_prefetch = 0 : i64, scratch_operands = 2 : i64, tpu.core_type = #tpu.core_type<tc>, window_params = [{transform_indices = @transform_0, window_bounds = array<i64: 1, 4, 256>}, {pipeline_mode = #tpu.pipeline_mode<synchronous>, transform_indices = @transform_1, window_bounds = array<i64: 32, 36>}, {pipeline_mode = #tpu.pipeline_mode<synchronous>, transform_indices = @transform_2, window_bounds = array<i64: 32, 1>}, {pipeline_mode = #tpu.pipeline_mode<synchronous>, transform_indices = @transform_3, window_bounds = array<i64: 8, 32>}, {pipeline_mode = #tpu.pipeline_mode<synchronous>, transform_indices = @transform_4, window_bounds = array<i64: 2, 256>}, {transform_indices = @transform_5, window_bounds = array<i64: 1, 8, 256>}]} {
    %cst = arith.constant 0.000000e+00 : f32
    %0 = vector.broadcast %cst : f32 to vector<4x290xf32>
    %c0 = arith.constant 0 : index
    %c0_0 = arith.constant 0 : index
    %1 = vector.load %arg7[%c0, %c0_0] : memref<4x290xf32, #tpu.memory_space<vmem>>, vector<4x290xf32>
    tpu.vector_store %arg7[%c0, %c0_0], %0 {strides = array<i32>} : memref<4x290xf32, #tpu.memory_space<vmem>>, vector<4x290xf32>,
    %c0_1 = arith.constant 0 : index
    %c0_2 = arith.constant 0 : index
    %c0_3 = arith.constant 0 : index
    %2 = vector.load %arg1[%c0_1, %c0_2, %c0_3] : memref<1x4x256xf32, #tpu.memory_space<vmem>>, vector<1x4x256xf32>
    %3 = vector.shape_cast %2 : vector<1x4x256xf32> to vector<4x256xf32>
    %c0_4 = arith.constant 0 : index
    %c17 = arith.constant 17 : index
    %4 = vector.load %arg7[%c0_4, %c17] : memref<4x290xf32, #tpu.memory_space<vmem>>, vector<4x256xf32>
    tpu.vector_store %arg7[%c0_4, %c17], %3 {strides = array<i32>} : memref<4x290xf32, #tpu.memory_space<vmem>>, vector<4x256xf32>,
    %c0_5 = arith.constant 0 : index
    %c0_6 = arith.constant 0 : index
    %5 = vector.load %arg5[%c0_5, %c0_6] : memref<2x256xf32, #tpu.memory_space<vmem>>, vector<1x256xf32>
    %c1 = arith.constant 1 : index
    %c0_7 = arith.constant 0 : index
    %6 = vector.load %arg5[%c1, %c0_7] : memref<2x256xf32, #tpu.memory_space<vmem>>, vector<1x256xf32>
    %c0_8 = arith.constant 0 : index
    %c0_9 = arith.constant 0 : index
    %7 = vector.load %arg7[%c0_8, %c0_9] : memref<4x290xf32, #tpu.memory_space<vmem>>, vector<4x256xf32>
    %8 = vector.broadcast %5 : vector<1x256xf32> to vector<4x256xf32>
    %9 = arith.mulf %7, %8 : vector<4x256xf32>
    %c0_10 = arith.constant 0 : index
    %c0_11 = arith.constant 0 : index
    %10 = vector.load %arg8[%c0_10, %c0_11] : memref<36x256xf32, #tpu.memory_space<vmem>>, vector<4x256xf32>
    tpu.vector_store %arg8[%c0_10, %c0_11], %9 {strides = array<i32>} : memref<36x256xf32, #tpu.memory_space<vmem>>, vector<4x256xf32>,
    %c0_12 = arith.constant 0 : index
    %c1_13 = arith.constant 1 : index
    %11 = vector.load %arg7[%c0_12, %c1_13] : memref<4x290xf32, #tpu.memory_space<vmem>>, vector<4x256xf32>
    %c4 = arith.constant 4 : index
    %c0_14 = arith.constant 0 : index
    %12 = vector.load %arg8[%c4, %c0_14] : memref<36x256xf32, #tpu.memory_space<vmem>>, vector<4x256xf32>
    tpu.vector_store %arg8[%c4, %c0_14], %11 {strides = array<i32>} : memref<36x256xf32, #tpu.memory_space<vmem>>, vector<4x256xf32>,
    %c0_15 = arith.constant 0 : index
    %c2 = arith.constant 2 : index
    %13 = vector.load %arg7[%c0_15, %c2] : memref<4x290xf32, #tpu.memory_space<vmem>>, vector<4x256xf32>
    %14 = vector.broadcast %6 : vector<1x256xf32> to vector<4x256xf32>
    %15 = arith.mulf %13, %14 : vector<4x256xf32>
    %c8 = arith.constant 8 : index
    %c0_16 = arith.constant 0 : index
    %16 = vector.load %arg8[%c8, %c0_16] : memref<36x256xf32, #tpu.memory_space<vmem>>, vector<4x256xf32>
    tpu.vector_store %arg8[%c8, %c0_16], %15 {strides = array<i32>} : memref<36x256xf32, #tpu.memory_space<vmem>>, vector<4x256xf32>,
    %c0_17 = arith.constant 0 : index
    %c16 = arith.constant 16 : index
    %17 = vector.load %arg7[%c0_17, %c16] : memref<4x290xf32, #tpu.memory_space<vmem>>, vector<4x256xf32>
    %18 = vector.broadcast %5 : vector<1x256xf32> to vector<4x256xf32>
    %19 = arith.mulf %17, %18 : vector<4x256xf32>
    %c12 = arith.constant 12 : index
    %c0_18 = arith.constant 0 : index
    %20 = vector.load %arg8[%c12, %c0_18] : memref<36x256xf32, #tpu.memory_space<vmem>>, vector<4x256xf32>
    tpu.vector_store %arg8[%c12, %c0_18], %19 {strides = array<i32>} : memref<36x256xf32, #tpu.memory_space<vmem>>, vector<4x256xf32>,
    %c0_19 = arith.constant 0 : index
    %c17_20 = arith.constant 17 : index
    %21 = vector.load %arg7[%c0_19, %c17_20] : memref<4x290xf32, #tpu.memory_space<vmem>>, vector<4x256xf32>
    %c16_21 = arith.constant 16 : index
    %c0_22 = arith.constant 0 : index
    %22 = vector.load %arg8[%c16_21, %c0_22] : memref<36x256xf32, #tpu.memory_space<vmem>>, vector<4x256xf32>
    tpu.vector_store %arg8[%c16_21, %c0_22], %21 {strides = array<i32>} : memref<36x256xf32, #tpu.memory_space<vmem>>, vector<4x256xf32>,
    %c0_23 = arith.constant 0 : index
    %c18 = arith.constant 18 : index
    %23 = vector.load %arg7[%c0_23, %c18] : memref<4x290xf32, #tpu.memory_space<vmem>>, vector<4x256xf32>
    %24 = vector.broadcast %6 : vector<1x256xf32> to vector<4x256xf32>
    %25 = arith.mulf %23, %24 : vector<4x256xf32>
    %c20 = arith.constant 20 : index
    %c0_24 = arith.constant 0 : index
    %26 = vector.load %arg8[%c20, %c0_24] : memref<36x256xf32, #tpu.memory_space<vmem>>, vector<4x256xf32>
    tpu.vector_store %arg8[%c20, %c0_24], %25 {strides = array<i32>} : memref<36x256xf32, #tpu.memory_space<vmem>>, vector<4x256xf32>,
    %c0_25 = arith.constant 0 : index
    %c32 = arith.constant 32 : index
    %27 = vector.load %arg7[%c0_25, %c32] : memref<4x290xf32, #tpu.memory_space<vmem>>, vector<4x256xf32>
    %28 = vector.broadcast %5 : vector<1x256xf32> to vector<4x256xf32>
    %29 = arith.mulf %27, %28 : vector<4x256xf32>
    %c24 = arith.constant 24 : index
    %c0_26 = arith.constant 0 : index
    %30 = vector.load %arg8[%c24, %c0_26] : memref<36x256xf32, #tpu.memory_space<vmem>>, vector<4x256xf32>
    tpu.vector_store %arg8[%c24, %c0_26], %29 {strides = array<i32>} : memref<36x256xf32, #tpu.memory_space<vmem>>, vector<4x256xf32>,
    %c0_27 = arith.constant 0 : index
    %c33 = arith.constant 33 : index
    %31 = vector.load %arg7[%c0_27, %c33] : memref<4x290xf32, #tpu.memory_space<vmem>>, vector<4x256xf32>
    %c28 = arith.constant 28 : index
    %c0_28 = arith.constant 0 : index
    %32 = vector.load %arg8[%c28, %c0_28] : memref<36x256xf32, #tpu.memory_space<vmem>>, vector<4x256xf32>
    tpu.vector_store %arg8[%c28, %c0_28], %31 {strides = array<i32>} : memref<36x256xf32, #tpu.memory_space<vmem>>, vector<4x256xf32>,
    %c0_29 = arith.constant 0 : index
    %c34 = arith.constant 34 : index
    %33 = vector.load %arg7[%c0_29, %c34] : memref<4x290xf32, #tpu.memory_space<vmem>>, vector<4x256xf32>
    %34 = vector.broadcast %6 : vector<1x256xf32> to vector<4x256xf32>
    %35 = arith.mulf %33, %34 : vector<4x256xf32>
    %c32_30 = arith.constant 32 : index
    %c0_31 = arith.constant 0 : index
    %36 = vector.load %arg8[%c32_30, %c0_31] : memref<36x256xf32, #tpu.memory_space<vmem>>, vector<4x256xf32>
    tpu.vector_store %arg8[%c32_30, %c0_31], %35 {strides = array<i32>} : memref<36x256xf32, #tpu.memory_space<vmem>>, vector<4x256xf32>,
    %c0_32 = arith.constant 0 : index
    %c0_33 = arith.constant 0 : index
    %37 = vector.load %arg2[%c0_32, %c0_33] : memref<32x36xf32, #tpu.memory_space<vmem>>, vector<32x36xf32>
    %c0_34 = arith.constant 0 : index
    %c0_35 = arith.constant 0 : index
    %38 = vector.load %arg8[%c0_34, %c0_35] : memref<36x256xf32, #tpu.memory_space<vmem>>, vector<36x256xf32>
    %cst_36 = arith.constant dense<0.000000e+00> : vector<32x256xf32>
    %39 = tpu.matmul %37, %38, %cst_36 {dimension_numbers = #tpu.dot_dimension_numbers<[1], [0], [0], [1], [0, 0, 1, 1], [], []>} : vector<32x36xf32>, vector<36x256xf32>, vector<32x256xf32> -> vector<32x256xf32>
    %c0_37 = arith.constant 0 : index
    %c0_38 = arith.constant 0 : index
    %40 = vector.load %arg3[%c0_37, %c0_38] : memref<32x1xf32, #tpu.memory_space<vmem>>, vector<32x1xf32>
    %41 = vector.broadcast %40 : vector<32x1xf32> to vector<32x256xf32>
    %42 = arith.addf %39, %41 : vector<32x256xf32>
    %cst_39 = arith.constant 0.000000e+00 : f32
    %43 = vector.broadcast %cst_39 : f32 to vector<32x256xf32>
    %44 = arith.maximumf %42, %43 : vector<32x256xf32>
    %c0_40 = arith.constant 0 : index
    %c0_41 = arith.constant 0 : index
    %45 = vector.load %arg4[%c0_40, %c0_41] : memref<8x32xf32, #tpu.memory_space<vmem>>, vector<8x32xf32>
    %cst_42 = arith.constant dense<0.000000e+00> : vector<8x256xf32>
    %46 = tpu.matmul %45, %44, %cst_42 {dimension_numbers = #tpu.dot_dimension_numbers<[1], [0], [0], [1], [0, 0, 1, 1], [], []>} : vector<8x32xf32>, vector<32x256xf32>, vector<8x256xf32> -> vector<8x256xf32>
    %c0_43 = arith.constant 0 : index
    %c0_44 = arith.constant 0 : index
    %c0_45 = arith.constant 0 : index
    %47 = vector.load %arg6[%c0_43, %c0_44, %c0_45] : memref<1x8x256xf32, #tpu.memory_space<vmem>>, vector<1x8x256xf32>
    %48 = vector.shape_cast %47 : vector<1x8x256xf32> to vector<8x256xf32>
    %49 = vector.shape_cast %46 : vector<8x256xf32> to vector<1x8x256xf32>
    tpu.vector_store %arg6[%c0_43, %c0_44, %c0_45], %49 {strides = array<i32>} : memref<1x8x256xf32, #tpu.memory_space<vmem>>, vector<1x8x256xf32>,
    return
  }
  func.func @transform_0(%arg0: i32) -> (i32, i32, i32) {
    %c0_i32 = arith.constant 0 : i32
    %c0_i32_0 = arith.constant 0 : i32
    %c0_i32_1 = arith.constant 0 : i32
    return %arg0, %c0_i32, %c0_i32_0 : i32, i32, i32
  }
  func.func @transform_1(%arg0: i32) -> (i32, i32) {
    %c0_i32 = arith.constant 0 : i32
    %c0_i32_0 = arith.constant 0 : i32
    %c0_i32_1 = arith.constant 0 : i32
    return %c0_i32, %c0_i32_0 : i32, i32
  }
  func.func @transform_2(%arg0: i32) -> (i32, i32) {
    %c0_i32 = arith.constant 0 : i32
    %c0_i32_0 = arith.constant 0 : i32
    %c0_i32_1 = arith.constant 0 : i32
    return %c0_i32, %c0_i32_0 : i32, i32
  }
  func.func @transform_3(%arg0: i32) -> (i32, i32) {
    %c0_i32 = arith.constant 0 : i32
    %c0_i32_0 = arith.constant 0 : i32
    %c0_i32_1 = arith.constant 0 : i32
    return %c0_i32, %c0_i32_0 : i32, i32
  }
  func.func @transform_4(%arg0: i32) -> (i32, i32) {
    %c0_i32 = arith.constant 0 : i32
    %c0_i32_0 = arith.constant 0 : i32
    %c0_i32_1 = arith.constant 0 : i32
    return %c0_i32, %c0_i32_0 : i32, i32
  }
  func.func @transform_5(%arg0: i32) -> (i32, i32, i32) {
    %c0_i32 = arith.constant 0 : i32
    %c0_i32_0 = arith.constant 0 : i32
    %c0_i32_1 = arith.constant 0 : i32
    return %arg0, %c0_i32, %c0_i32_0 : i32, i32, i32
  }
}

</mosaic_0001>

<llo_original>
// kernel: bisenet_output.1
$region0: #{bisenet_output.1}
  #allocation0 [shape = 'u32[]', space=smem, size = 0x4, offset = 0x4, fixed_abs, tag = 'smem constant byte address 0x4 - core index']
  #allocation1 [shape = 'u32[144,128]{1,0:T(1,128)}', space=vmem, size = 0x12000, scoped, tag = 'internal scratch']
  #allocation2 [shape = 'f32[4,290]{1,0:T(4,128)}', space=vmem, size = 0x1800, scoped, tag = 'scratch operand']
  #allocation3 [shape = 'f32[36,256]{1,0:T(8,128)}', space=vmem, size = 0xa000, scoped, tag = 'scratch operand']
  %s0 = inlined_call_operand.vmem [shape: f32[2,4,256], index: 0, kind: input, shape index: {}]
  %s1 = inlined_call_operand.vmem [shape: f32[32,36], index: 1, kind: input, shape index: {}]
  %s2 = inlined_call_operand.vmem [shape: f32[32,1], index: 2, kind: input, shape index: {}]
  %s3 = inlined_call_operand.vmem [shape: f32[8,32], index: 3, kind: input, shape index: {}]
  %s4 = inlined_call_operand.vmem [shape: f32[2,256], index: 4, kind: input, shape index: {}]
  %s5 = inlined_call_operand.vmem [shape: f32[2,8,256], index: 5, kind: output, shape index: {}]
  %s6 = sld [smem:[#allocation0]]
  $region53: #{bisenet_output.1} parent=0
    _
  %s8 = ssub.s32 1, %s6
  %s9 = scalar_select 0, %s8, %s6
  loop: start=0, step=1, limit=4
  $region2: #{bisenet_output.1} parent=0 // loop_pre_header
    _
  $region3: #{bisenet_output.1} parent=0 // loop_header
    %s11 = sphi 0, %s15
    %p12 = scmp.ge.s32.totalorder %s11, 4
    %s21 = sphi 0, %s23
    %s24 = sphi 0, %s21
    %s25 = sphi 0, %s24
    %s41 = sphi 0, %s25
    %s45 = sphi 0, %s45
    %s47 = sphi 0, %s45
    %s48 = sphi 0, %s47
    %s62 = sphi 0, %s48
    %s66 = sphi 0, %s66
    %s68 = sphi 0, %s66
    %s69 = sphi 0, %s68
    %s83 = sphi 0, %s69
    %s87 = sphi 0, %s87
    %s89 = sphi 0, %s87
    %s90 = sphi 0, %s89
    %s104 = sphi 0, %s90
    %s108 = sphi 0, %s108
    %s110 = sphi 0, %s108
    %s111 = sphi 0, %s110
    %s125 = sphi 0, %s111
    %s131 = sphi 0, %s133
    %s134 = sphi 0, %s131
    %s135 = sphi 0, %s134
    %s151 = sphi 0, %s135
  $region4: #{bisenet_output.1} parent=0 // loop_header_branch
    %14 = sbr.rel (%p12) target = $region8
  $region5: #{bisenet_output.1} parent=0 // loop_body
    %s16 = ssub.s32 %s11, 1
    %s17 = ssub.s32 %s11, 2
    %s18 = sadd.s32 %s11, 1
    %s19 = ssub.s32 %s11, %s18
    %p20 = scmp.eq.s32.totalorder %s19, 0
    %s22 = sadd.s32 %s21, 1
    %s23 = scalar_select %p20, %s21, %s22
    %p26 = pneg %p20
    %p27 = scmp.eq.s32.totalorder %s11, 1
    %p28 = por %p26, %p27
    %p29 = scmp.ne.s32.totalorder %s21, %s24
    %p30 = scmp.eq.s32.totalorder %s11, 0
    %p31 = por %p29, %p30
    %p32 = scmp.ne.s32.totalorder %s21, %s24
    %p33 = scmp.eq.s32.totalorder %s16, 1
    %p34 = por %p32, %p33
    %p35 = scmp.ne.s32.totalorder %s24, %s25
    %p36 = scmp.eq.s32.totalorder %s16, 0
    %p37 = por %p35, %p36
    %p38 = scmp.ne.s32.totalorder %s24, %s25
    %p39 = scmp.eq.s32.totalorder %s17, 1
    %p40 = por %p38, %p39
    %p42 = scmp.ne.s32.totalorder %s25, %s41
    %p43 = scmp.eq.s32.totalorder %s17, 0
    %p44 = por %p42, %p43
    %s46 = sadd.s32 %s45, 1
    %p49 = scmp.eq.s32.totalorder %s11, 1
    %p50 = scmp.ne.s32.totalorder %s45, %s47
    %p51 = scmp.eq.s32.totalorder %s11, 0
    %p52 = por %p50, %p51
    %p53 = scmp.ne.s32.totalorder %s45, %s47
    %p54 = scmp.eq.s32.totalorder %s16, 1
    %p55 = por %p53, %p54
    %p56 = scmp.ne.s32.totalorder %s47, %s48
    %p57 = scmp.eq.s32.totalorder %s16, 0
    %p58 = por %p56, %p57
    %p59 = scmp.ne.s32.totalorder %s47, %s48
    %p60 = scmp.eq.s32.totalorder %s17, 1
    %p61 = por %p59, %p60
    %p63 = scmp.ne.s32.totalorder %s48, %s62
    %p64 = scmp.eq.s32.totalorder %s17, 0
    %p65 = por %p63, %p64
    %s67 = sadd.s32 %s66, 1
    %p70 = scmp.eq.s32.totalorder %s11, 1
    %p71 = scmp.ne.s32.totalorder %s66, %s68
    %p72 = scmp.eq.s32.totalorder %s11, 0
    %p73 = por %p71, %p72
    %p74 = scmp.ne.s32.totalorder %s66, %s68
    %p75 = scmp.eq.s32.totalorder %s16, 1
    %p76 = por %p74, %p75
    %p77 = scmp.ne.s32.totalorder %s68, %s69
    %p78 = scmp.eq.s32.totalorder %s16, 0
    %p79 = por %p77, %p78
    %p80 = scmp.ne.s32.totalorder %s68, %s69
    %p81 = scmp.eq.s32.totalorder %s17, 1
    %p82 = por %p80, %p81
    %p84 = scmp.ne.s32.totalorder %s69, %s83
    %p85 = scmp.eq.s32.totalorder %s17, 0
    %p86 = por %p84, %p85
    %s88 = sadd.s32 %s87, 1
    %p91 = scmp.eq.s32.totalorder %s11, 1
    %p92 = scmp.ne.s32.totalorder %s87, %s89
    %p93 = scmp.eq.s32.totalorder %s11, 0
    %p94 = por %p92, %p93
    %p95 = scmp.ne.s32.totalorder %s87, %s89
    %p96 = scmp.eq.s32.totalorder %s16, 1
    %p97 = por %p95, %p96
    %p98 = scmp.ne.s32.totalorder %s89, %s90
    %p99 = scmp.eq.s32.totalorder %s16, 0
    %p100 = por %p98, %p99
    %p101 = scmp.ne.s32.totalorder %s89, %s90
    %p102 = scmp.eq.s32.totalorder %s17, 1
    %p103 = por %p101, %p102
    %p105 = scmp.ne.s32.totalorder %s90, %s104
    %p106 = scmp.eq.s32.totalorder %s17, 0
    %p107 = por %p105, %p106
    %s109 = sadd.s32 %s108, 1
    %p112 = scmp.eq.s32.totalorder %s11, 1
    %p113 = scmp.ne.s32.totalorder %s108, %s110
    %p114 = scmp.eq.s32.totalorder %s11, 0
    %p115 = por %p113, %p114
    %p116 = scmp.ne.s32.totalorder %s108, %s110
    %p117 = scmp.eq.s32.totalorder %s16, 1
    %p118 = por %p116, %p117
    %p119 = scmp.ne.s32.totalorder %s110, %s111
    %p120 = scmp.eq.s32.totalorder %s16, 0
    %p121 = por %p119, %p120
    %p122 = scmp.ne.s32.totalorder %s110, %s111
    %p123 = scmp.eq.s32.totalorder %s17, 1
    %p124 = por %p122, %p123
    %p126 = scmp.ne.s32.totalorder %s111, %s125
    %p127 = scmp.eq.s32.totalorder %s17, 0
    %p128 = por %p126, %p127
    %s129 = ssub.s32 %s11, %s18
    %p130 = scmp.eq.s32.totalorder %s129, 0
    %s132 = sadd.s32 %s131, 1
    %s133 = scalar_select %p130, %s131, %s132
    %p136 = pneg %p130
    %p137 = scmp.eq.s32.totalorder %s11, 1
    %p138 = por %p136, %p137
    %p139 = scmp.ne.s32.totalorder %s131, %s134
    %p140 = scmp.eq.s32.totalorder %s11, 0
    %p141 = por %p139, %p140
    %p142 = scmp.ne.s32.totalorder %s131, %s134
    %p143 = scmp.eq.s32.totalorder %s16, 1
    %p144 = por %p142, %p143
    %p145 = scmp.ne.s32.totalorder %s134, %s135
    %p146 = scmp.eq.s32.totalorder %s16, 0
    %p147 = por %p145, %p146
    %p148 = scmp.ne.s32.totalorder %s134, %s135
    %p149 = scmp.eq.s32.totalorder %s17, 1
    %p150 = por %p148, %p149
    %p152 = scmp.ne.s32.totalorder %s135, %s151
    %p153 = scmp.eq.s32.totalorder %s17, 0
    %p154 = por %p152, %p153
    %p155 = scmp.le.s32.totalorder 1, %s11
    %p156 = scmp.lt.s32.totalorder %s11, 3
    %p157 = pnand %p155, %p156
    %p158 = pneg %p157
    // Predicated region
    $region9: #{bisenet_output.1} parent=5 // pred_check
      _
    $region10: #{bisenet_output.1} parent=5 // pred_check_branch
      %160 = sbr.rel (%p157) target = $region12
    $region11: #{bisenet_output.1} parent=5 // pred_region
      %s161 = ssub.s32 %s11, 1
      // Predicated region
      $region13: #{bisenet_output.1} parent=11 // pred_check
        %p162 = pneg %p58
      $region14: #{bisenet_output.1} parent=11 // pred_check_branch
        %164 = sbr.rel (%p162) target = $region16
      $region15: #{bisenet_output.1} parent=11 // pred_region
        _
      $region16: #{bisenet_output.1} parent=11 // pred_fallthru
        _
      // Predicated region
      $region17: #{bisenet_output.1} parent=11 // pred_check
        %p165 = pneg %p79
      $region18: #{bisenet_output.1} parent=11 // pred_check_branch
        %167 = sbr.rel (%p165) target = $region20
      $region19: #{bisenet_output.1} parent=11 // pred_region
        _
      $region20: #{bisenet_output.1} parent=11 // pred_fallthru
        _
      // Predicated region
      $region21: #{bisenet_output.1} parent=11 // pred_check
        %p168 = pneg %p100
      $region22: #{bisenet_output.1} parent=11 // pred_check_branch
        %170 = sbr.rel (%p168) target = $region24
      $region23: #{bisenet_output.1} parent=11 // pred_region
        _
      $region24: #{bisenet_output.1} parent=11 // pred_fallthru
        _
      // Predicated region
      $region25: #{bisenet_output.1} parent=11 // pred_check
        %p171 = pneg %p121
      $region26: #{bisenet_output.1} parent=11 // pred_check_branch
        %173 = sbr.rel (%p171) target = $region28
      $region27: #{bisenet_output.1} parent=11 // pred_region
        _
      $region28: #{bisenet_output.1} parent=11 // pred_fallthru
        _
    $region12: #{bisenet_output.1} parent=5 // pred_fallthru
      _
    %p174 = scmp.lt.s32.totalorder %s11, 2
    // Predicated region
    $region29: #{bisenet_output.1} parent=5 // pred_check
      %p175 = pneg %p174
    $region30: #{bisenet_output.1} parent=5 // pred_check_branch
      %177 = sbr.rel (%p175) target = $region32
    $region31: #{bisenet_output.1} parent=5 // pred_region
      // Predicated region
      $region33: #{bisenet_output.1} parent=31 // pred_check
        %p178 = pneg %p31
      $region34: #{bisenet_output.1} parent=31 // pred_check_branch
        %180 = sbr.rel (%p178) target = $region36
      $region35: #{bisenet_output.1} parent=31 // pred_region
        %p181 = scmp.lt.s32.totalorder %s11, 1
        %s182 = scalar_select %p181, %s11, 1
        %s183 = smul.addr %s182, 2
        %s184 = smul.addr %s183, 4
        %s185 = scalar_lea.vmem %s0, %s184
      $region36: #{bisenet_output.1} parent=31 // pred_fallthru
        _
    $region32: #{bisenet_output.1} parent=5 // pred_fallthru
      _
    %p186 = scmp.le.s32.totalorder 1, %s11
    %p187 = scmp.lt.s32.totalorder %s11, 3
    %p188 = pnand %p186, %p187
    %p189 = pneg %p188
    // Predicated region
    $region37: #{bisenet_output.1} parent=5 // pred_check
      _
    $region38: #{bisenet_output.1} parent=5 // pred_check_branch
      %191 = sbr.rel (%p188) target = $region40
    $region39: #{bisenet_output.1} parent=5 // pred_region
      %s192 = ssub.s32 %s11, 1
      %p193 = scmp.lt.s32.totalorder %s16, 1
      %s194 = scalar_select %p193, %s16, 1
      %s195 = smul.addr %s194, 2
      %s196 = smul.addr %s195, 4
      %s197 = scalar_lea.vmem %s0, %s196
      %p198 = pneg %p37
      %p199 = pneg %p34
      %p200 = pneg %p58
      %p201 = pneg %p55
      %p202 = pneg %p79
      %p203 = pneg %p76
      %p204 = pneg %p100
      %p205 = pneg %p97
      %p206 = pneg %p121
      %p207 = pneg %p118
      %p208 = pneg %p147
      %p209 = pneg %p144
      %p210 = scmp.lt.s32.totalorder %s16, 1
      %s211 = scalar_select %p210, %s16, 1
      %s212 = smul.addr %s211, 2
      %s213 = smul.addr %s212, 8
      %s214 = scalar_lea.vmem %s5, %s213
      %p215 = scmp.lt.s32.totalorder %s16, 1
      %s216 = scalar_select %p215, %s16, 1
      %s217 = smul.addr %s216, 2
      %s218 = smul.addr %s217, 4
      %s219 = scalar_lea.vmem %s0, %s218
      %p220 = scmp.lt.s32.totalorder %s16, 1
      %s221 = scalar_select %p220, %s16, 1
      %s222 = smul.addr %s221, 2
      %s223 = smul.addr %s222, 8
      %s224 = scalar_lea.vmem %s5, %s223
      %225 = vst [vmem:[#allocation2] sm:$0xff] 0.0
      %vm226 = vcmask 273408
      %227 = vst.msk [vmem:[#allocation2 + $0x8] sm:$0xf] %vm226, 0.0
      %v228 = vld [vmem:[%s219] sm:$0xff]
      %230 = vrot.lane.b32.xlu0 %v228, 17
      %v231 = vpop.permute.xlu0 %230
      %v232 = vrot.slane %v231, 4
      %vm233 = vcmask 138240
      %v234 = vsel %vm233, %v232, %v231
      %vm237 = vcmask 1043592
      %vm238 = vcmask 1047556
      %vm239 = vmor %vm238, %vm237
      %240 = vst.msk [vmem:[#allocation2] sm:$0xff] %vm239, %v234
      %vm241 = vcmask 134144
      %242 = vst.msk [vmem:[#allocation2 + $0x8] sm:$0xf] %vm241, %v232
      %v243 = vld [vmem:[%s4] ss:$2 sm:$0x3]
      %s244 = scalar_lea.vmem %s4, 1
      %v245 = vld [vmem:[%s244] ss:$2 sm:$0x3]
      %v246 = vld [vmem:[#allocation2] sm:$0xff]
      %v248 = vlaneseq
      %v249 = vshrl.u32 %v248, 7
      %v250 = vsub.s32 0, %v249
      %v251 = vrot.slane %v243, %v250
      %v252 = vlaneseq
      %v253 = vshrl.u32 %v252, 7
      %v254 = vsub.s32 1, %v253
      %v255 = vrot.slane %v243, %v254
      %v256 = vcombine.low %v251, %v255
      %v258 = vmul.f32 %v246, %v256
      %v260 = vcombine.high %v258, %v258
      %262 = vst [vmem:[#allocation3] sm:$0xf] %v258
      %263 = vst [vmem:[#allocation3 + $0x8] sm:$0xf] %v260
      %v264 = vld [vmem:[#allocation2] sm:$0xff]
      %v265 = vld [vmem:[#allocation2 + $0x8] sm:$0xf]
      %v268 = vcombine.low %v264, %v264
      %v269 = vcombine.low %v265, %v265
      %270 = vrot.lane.b32.xlu0 %v268, 127
      %v271 = vpop.permute.xlu0 %270
      %272 = vrot.lane.b32.xlu0 %v264, 127
      %v273 = vpop.permute.xlu0 %272
      %274 = vrot.lane.b32.xlu0 %v269, 127
      %v275 = vpop.permute.xlu0 %274
      %vm276 = vcmask 1039360
      %v277 = vsel %vm276, %v271, %v273
      %v278 = vsel %vm276, %v273, %v275
      %281 = vst [vmem:[#allocation3] sm:$0xf0] %v277
      %282 = vst [vmem:[#allocation3 + $0x8] sm:$0xf0] %v278
      %v283 = vld [vmem:[#allocation2] sm:$0xff]
      %v284 = vld [vmem:[#allocation2 + $0x8] sm:$0xf]
      %v286 = vlaneseq
      %v287 = vshrl.u32 %v286, 7
      %v288 = vsub.s32 0, %v287
      %v289 = vrot.slane %v245, %v288
      %v290 = vlaneseq
      %v291 = vshrl.u32 %v290, 7
      %v292 = vsub.s32 1, %v291
      %v293 = vrot.slane %v245, %v292
      %v294 = vcombine.low %v289, %v293
      %295 = vrot.lane.b32.xlu0 %v294, 2
      %v296 = vpop.permute.xlu0 %295
      %v297 = vrot.slane %v296, 4
      %vm298 = vcmask 15360
      %v299 = vsel %vm298, %v297, %v296
      %v302 = vmul.f32 %v283, %v299
      %v303 = vmul.f32 %v284, %v297
      %v306 = vcombine.high %v302, %v302
      %307 = vrot.lane.b32.xlu0 %v302, 126
      %v308 = vpop.permute.xlu0 %307
      %309 = vrot.lane.b32.xlu0 %v306, 126
      %v310 = vpop.permute.xlu0 %309
      %311 = vrot.lane.b32.xlu0 %v303, 126
      %v312 = vpop.permute.xlu0 %311
      %vm313 = vcmask 1031168
      %v314 = vsel %vm313, %v308, %v310
      %v315 = vsel %vm313, %v310, %v312
      %318 = vst [vmem:[#allocation3 + $0x10] sm:$0xf] %v314
      %319 = vst [vmem:[#allocation3 + $0x18] sm:$0xf] %v315
      %v320 = vld [vmem:[#allocation2] sm:$0xff]
      %v321 = vld [vmem:[#allocation2 + $0x8] sm:$0xf]
      %322 = vrot.lane.b32.xlu0 %v256, 16
      %v323 = vpop.permute.xlu0 %322
      %v324 = vrot.slane %v323, 4
      %vm325 = vcmask 130048
      %v326 = vsel %vm325, %v324, %v323
      %v329 = vmul.f32 %v320, %v326
      %v330 = vmul.f32 %v321, %v324
      %v333 = vcombine.low %v329, %v329
      %v334 = vcombine.low %v330, %v330
      %335 = vrot.lane.b32.xlu0 %v333, 112
      %v336 = vpop.permute.xlu0 %335
      %337 = vrot.lane.b32.xlu0 %v329, 112
      %v338 = vpop.permute.xlu0 %337
      %339 = vrot.lane.b32.xlu0 %v334, 112
      %v340 = vpop.permute.xlu0 %339
      %vm341 = vcmask 916480
      %v342 = vsel %vm341, %v336, %v338
      %v343 = vsel %vm341, %v338, %v340
      %346 = vst [vmem:[#allocation3 + $0x10] sm:$0xf0] %v342
      %347 = vst [vmem:[#allocation3 + $0x18] sm:$0xf0] %v343
      %v348 = vld [vmem:[#allocation2] sm:$0xff]
      %v349 = vld [vmem:[#allocation2 + $0x8] sm:$0xf]
      %v352 = vcombine.high %v348, %v348
      %353 = vrot.lane.b32.xlu0 %v348, 111
      %v354 = vpop.permute.xlu0 %353
      %355 = vrot.lane.b32.xlu0 %v352, 111
      %v356 = vpop.permute.xlu0 %355
      %357 = vrot.lane.b32.xlu0 %v349, 111
      %v358 = vpop.permute.xlu0 %357
      %vm359 = vcmask 908288
      %v360 = vsel %vm359, %v354, %v356
      %v361 = vsel %vm359, %v356, %v358
      %364 = vst [vmem:[#allocation3 + $0x20] sm:$0xf] %v360
      %365 = vst [vmem:[#allocation3 + $0x28] sm:$0xf] %v361
      %v366 = vld [vmem:[#allocation2] sm:$0xff]
      %v367 = vld [vmem:[#allocation2 + $0x8] sm:$0xf]
      %368 = vrot.lane.b32.xlu0 %v294, 18
      %v369 = vpop.permute.xlu0 %368
      %v370 = vrot.slane %v369, 4
      %vm371 = vcmask 146432
      %v372 = vsel %vm371, %v370, %v369
      %v375 = vmul.f32 %v366, %v372
      %v376 = vmul.f32 %v367, %v370
      %v379 = vcombine.low %v375, %v375
      %v380 = vcombine.low %v376, %v376
      %381 = vrot.lane.b32.xlu0 %v379, 110
      %v382 = vpop.permute.xlu0 %381
      %383 = vrot.lane.b32.xlu0 %v375, 110
      %v384 = vpop.permute.xlu0 %383
      %385 = vrot.lane.b32.xlu0 %v380, 110
      %v386 = vpop.permute.xlu0 %385
      %vm387 = vcmask 900096
      %v388 = vsel %vm387, %v382, %v384
      %v389 = vsel %vm387, %v384, %v386
      %392 = vst [vmem:[#allocation3 + $0x20] sm:$0xf0] %v388
      %393 = vst [vmem:[#allocation3 + $0x28] sm:$0xf0] %v389
      %v394 = vld [vmem:[#allocation2] sm:$0xff]
      %v395 = vld [vmem:[#allocation2 + $0x8] sm:$0xf]
      %396 = vrot.lane.b32.xlu0 %v256, 32
      %v397 = vpop.permute.xlu0 %396
      %v398 = vrot.slane %v397, 4
      %vm399 = vcmask 261120
      %v400 = vsel %vm399, %v398, %v397
      %v403 = vmul.f32 %v394, %v400
      %v404 = vmul.f32 %v395, %v398
      %v407 = vcombine.high %v403, %v403
      %408 = vrot.lane.b32.xlu0 %v403, 96
      %v409 = vpop.permute.xlu0 %408
      %410 = vrot.lane.b32.xlu0 %v407, 96
      %v411 = vpop.permute.xlu0 %410
      %412 = vrot.lane.b32.xlu0 %v404, 96
      %v413 = vpop.permute.xlu0 %412
      %vm414 = vcmask 785408
      %v415 = vsel %vm414, %v409, %v411
      %v416 = vsel %vm414, %v411, %v413
      %419 = vst [vmem:[#allocation3 + $0x30] sm:$0xf] %v415
      %420 = vst [vmem:[#allocation3 + $0x38] sm:$0xf] %v416
      %v421 = vld [vmem:[#allocation2] sm:$0xff]
      %v422 = vld [vmem:[#allocation2 + $0x8] sm:$0xf]
      %v425 = vcombine.low %v421, %v421
      %v426 = vcombine.low %v422, %v422
      %427 = vrot.lane.b32.xlu0 %v425, 95
      %v428 = vpop.permute.xlu0 %427
      %429 = vrot.lane.b32.xlu0 %v421, 95
      %v430 = vpop.permute.xlu0 %429
      %431 = vrot.lane.b32.xlu0 %v426, 95
      %v432 = vpop.permute.xlu0 %431
      %vm433 = vcmask 777216
      %v434 = vsel %vm433, %v428, %v430
      %v435 = vsel %vm433, %v430, %v432
      %438 = vst [vmem:[#allocation3 + $0x30] sm:$0xf0] %v434
      %439 = vst [vmem:[#allocation3 + $0x38] sm:$0xf0] %v435
      %v440 = vld [vmem:[#allocation2] sm:$0xff]
      %v441 = vld [vmem:[#allocation2 + $0x8] sm:$0xf]
      %442 = vrot.lane.b32.xlu0 %v294, 34
      %v443 = vpop.permute.xlu0 %442
      %v444 = vrot.slane %v443, 4
      %vm445 = vcmask 277504
      %v446 = vsel %vm445, %v444, %v443
      %v449 = vmul.f32 %v440, %v446
      %v450 = vmul.f32 %v441, %v444
      %v453 = vcombine.high %v449, %v449
      %454 = vrot.lane.b32.xlu0 %v449, 94
      %v455 = vpop.permute.xlu0 %454
      %456 = vrot.lane.b32.xlu0 %v453, 94
      %v457 = vpop.permute.xlu0 %456
      %458 = vrot.lane.b32.xlu0 %v450, 94
      %v459 = vpop.permute.xlu0 %458
      %vm460 = vcmask 769024
      %v461 = vsel %vm460, %v455, %v457
      %v462 = vsel %vm460, %v457, %v459
      %465 = vst [vmem:[#allocation3 + $0x40] sm:$0xf] %v461
      %466 = vst [vmem:[#allocation3 + $0x48] sm:$0xf] %v462
      %v467 = vld [vmem:[%s1] sm:$0xff]
      %v468 = vld [vmem:[%s1 + $0x8] sm:$0xff]
      %v469 = vld [vmem:[%s1 + $0x10] sm:$0xff]
      %v470 = vld [vmem:[%s1 + $0x18] sm:$0xff]
      %v471 = vld [vmem:[#allocation3] sm:$0xff]
      %v472 = vld [vmem:[#allocation3 + $0x8] sm:$0xff]
      %v473 = vld [vmem:[#allocation3 + $0x10] sm:$0xff]
      %v474 = vld [vmem:[#allocation3 + $0x18] sm:$0xff]
      %v475 = vld [vmem:[#allocation3 + $0x20] sm:$0xff]
      %v476 = vld [vmem:[#allocation3 + $0x28] sm:$0xff]
      %v477 = vld [vmem:[#allocation3 + $0x30] sm:$0xff]
      %v478 = vld [vmem:[#allocation3 + $0x38] sm:$0xff]
      %v479 = vld [vmem:[#allocation3 + $0x40] sm:$0xf]
      %v480 = vld [vmem:[#allocation3 + $0x48] sm:$0xf]
      %v481 = vld [vmem:[%s2] sm:$0xff]
      %v482 = vld [vmem:[%s2 + $0x8] sm:$0xff]
      %v483 = vld [vmem:[%s2 + $0x10] sm:$0xff]
      %v484 = vld [vmem:[%s2 + $0x18] sm:$0xff]
      %486 = vset.pattern.permute.xlu0 0
      %487 = vperm.xlu0 %486, %v481
      %v488 = vpop.permute.xlu0 %487
      %491 = vset.pattern.permute.xlu0 0
      %492 = vperm.xlu0 %491, %v482
      %v493 = vpop.permute.xlu0 %492
      %496 = vset.pattern.permute.xlu0 0
      %497 = vperm.xlu0 %496, %v483
      %v498 = vpop.permute.xlu0 %497
      %501 = vset.pattern.permute.xlu0 0
      %502 = vperm.xlu0 %501, %v484
      %v503 = vpop.permute.xlu0 %502
      %vm505 = vcmask 293888
      %v507 = vsel %vm505, %v467, 0
      %v510 = vsel %vm505, %v468, 0
      %v513 = vsel %vm505, %v469, 0
      %v516 = vsel %vm505, %v470, 0
      %vm518 = vcmask 1043456
      %v520 = vsel %vm518, %v479, 0
      %v523 = vsel %vm518, %v480, 0
      %525 = vmatprep.subr.mxu0 0.0
      %526 = vmatpush1.msra.mxu0 0.0
      %527 = vmatprep.subr.mxu0 0.0
      %528 = vmatpush1.msra.mxu0 0.0
      %529 = vmatprep.subr.mxu0 0.0
      %530 = vmatpush1.msra.mxu0 0.0
      %531 = vmatprep.subr.mxu0 0.0
      %532 = vmatpush1.msra.mxu0 0.0
      %533 = vmatprep.subr.mxu0 0.0
      %534 = vmatpush1.msra.mxu0 0.0
      %535 = vmatprep.subr.mxu0 0.0
      %536 = vmatpush1.msra.mxu0 0.0
      %537 = vmatprep.subr.mxu0 0.0
      %538 = vmatpush1.msra.mxu0 0.0
      %539 = vmatprep.subr.mxu0 0.0
      %540 = vmatpush1.msra.mxu0 0.0
      %541 = vmatprep.subr.mxu0 0.0
      %542 = vmatpush1.msra.mxu0 0.0
      %543 = vmatprep.subr.mxu0 0.0
      %544 = vmatpush1.msra.mxu0 0.0
      %545 = vmatprep.subr.mxu0 0.0
      %546 = vmatpush1.msra.mxu0 0.0
      %547 = vmatprep.subr.mxu0 %v523
      %548 = vmatpush1.msra.mxu0 %v520
      %549 = vmatprep.subr.mxu0 %v478
      %550 = vmatpush1.msra.mxu0 %v477
      %551 = vmatprep.subr.mxu0 %v476
      %552 = vmatpush1.msra.mxu0 %v475
      %553 = vmatprep.subr.mxu0 %v474
      %554 = vmatpush1.msra.mxu0 %v473
      %555 = vmatprep.subr.mxu0 %v472
      %556 = vmatpush1.msra.mxu0 %v471
      %557 = vmatprep.subr.mxu0 0.0
      %558 = vmatpush2.msra.mxu0 0.0
      %559 = vmatprep.subr.mxu0 0.0
      %560 = vmatpush2.msra.mxu0 0.0
      %561 = vmatprep.subr.mxu0 0.0
      %562 = vmatpush2.msra.mxu0 0.0
      %563 = vmatprep.subr.mxu0 0.0
      %564 = vmatpush2.msra.mxu0 0.0
      %565 = vmatprep.subr.mxu0 0.0
      %566 = vmatpush2.msra.mxu0 0.0
      %567 = vmatprep.subr.mxu0 0.0
      %568 = vmatpush2.msra.mxu0 0.0
      %569 = vmatprep.subr.mxu0 0.0
      %570 = vmatpush2.msra.mxu0 0.0
      %571 = vmatprep.subr.mxu0 0.0
      %572 = vmatpush2.msra.mxu0 0.0
      %573 = vmatprep.subr.mxu0 0.0
      %574 = vmatpush2.msra.mxu0 0.0
      %575 = vmatprep.subr.mxu0 0.0
      %576 = vmatpush2.msra.mxu0 0.0
      %577 = vmatprep.subr.mxu0 0.0
      %578 = vmatpush2.msra.mxu0 0.0
      %579 = vmatprep.subr.mxu0 0.0
      %580 = vmatpush2.msra.mxu0 0.0
      %581 = vmatprep.subr.mxu0 0.0
      %582 = vmatpush2.msra.mxu0 0.0
      %583 = vmatprep.subr.mxu0 0.0
      %584 = vmatpush2.msra.mxu0 0.0
      %585 = vmatprep.subr.mxu0 0.0
      %586 = vmatpush2.msra.mxu0 0.0
      %587 = vmatprep.subr.mxu0 0.0
      %588 = vmatpush2.msra.mxu0 0.0
      %589 = vmatprep.mubr.f32.mxu0 0.0
      %590 = vmatmul.mubr.f32.gmra.mxu0 %v507
      %v591 = vpop.f32.mrf.mxu0
      %v592 = vadd.f32 %v488, %v591
      %v593 = vpop.f32.mrf.mxu0
      %v594 = vadd.f32 %v488, %v593
      %595 = vmatprep.mubr.f32.mxu0 0.0
      %596 = vmatmul.mubr.f32.gmra.mxu0 %v510
      %v597 = vpop.f32.mrf.mxu0
      %v598 = vadd.f32 %v493, %v597
      %v599 = vpop.f32.mrf.mxu0
      %v600 = vadd.f32 %v493, %v599
      %601 = vmatprep.mubr.f32.mxu0 0.0
      %602 = vmatmul.mubr.f32.gmra.mxu0 %v513
      %v603 = vpop.f32.mrf.mxu0
      %v604 = vadd.f32 %v498, %v603
      %v605 = vpop.f32.mrf.mxu0
      %v606 = vadd.f32 %v498, %v605
      %607 = vmatprep.mubr.f32.mxu0 0.0
      %608 = vmatmul.mubr.f32.gmra.mxu0 %v516
      %v609 = vpop.f32.mrf.mxu0
      %v610 = vadd.f32 %v503, %v609
      %v611 = vpop.f32.mrf.mxu0
      %v612 = vadd.f32 %v503, %v611
      %613 = vdwg.mxu0
      %v614 = vmax.f32 %v592, 0.0
      %v615 = vmax.f32 %v594, 0.0
      %v616 = vmax.f32 %v598, 0.0
      %v617 = vmax.f32 %v600, 0.0
      %v618 = vmax.f32 %v604, 0.0
      %v619 = vmax.f32 %v606, 0.0
      %v620 = vmax.f32 %v610, 0.0
      %v621 = vmax.f32 %v612, 0.0
      %v622 = vld [vmem:[%s3] sm:$0xff]
      %v624 = vsel %vm399, %v622, 0
      %626 = vmatprep.subr.mxu0 0.0
      %627 = vmatpush1.msra.mxu0 0.0
      %628 = vmatprep.subr.mxu0 0.0
      %629 = vmatpush1.msra.mxu0 0.0
      %630 = vmatprep.subr.mxu0 0.0
      %631 = vmatpush1.msra.mxu0 0.0
      %632 = vmatprep.subr.mxu0 0.0
      %633 = vmatpush1.msra.mxu0 0.0
      %634 = vmatprep.subr.mxu0 0.0
      %635 = vmatpush1.msra.mxu0 0.0
      %636 = vmatprep.subr.mxu0 0.0
      %637 = vmatpush1.msra.mxu0 0.0
      %638 = vmatprep.subr.mxu0 0.0
      %639 = vmatpush1.msra.mxu0 0.0
      %640 = vmatprep.subr.mxu0 0.0
      %641 = vmatpush1.msra.mxu0 0.0
      %642 = vmatprep.subr.mxu0 0.0
      %643 = vmatpush1.msra.mxu0 0.0
      %644 = vmatprep.subr.mxu0 0.0
      %645 = vmatpush1.msra.mxu0 0.0
      %646 = vmatprep.subr.mxu0 0.0
      %647 = vmatpush1.msra.mxu0 0.0
      %648 = vmatprep.subr.mxu0 0.0
      %649 = vmatpush1.msra.mxu0 0.0
      %650 = vmatprep.subr.mxu0 %v621
      %651 = vmatpush1.msra.mxu0 %v620
      %652 = vmatprep.subr.mxu0 %v619
      %653 = vmatpush1.msra.mxu0 %v618
      %654 = vmatprep.subr.mxu0 %v617
      %655 = vmatpush1.msra.mxu0 %v616
      %656 = vmatprep.subr.mxu0 %v615
      %657 = vmatpush1.msra.mxu0 %v614
      %658 = vmatprep.subr.mxu0 0.0
      %659 = vmatpush2.msra.mxu0 0.0
      %660 = vmatprep.subr.mxu0 0.0
      %661 = vmatpush2.msra.mxu0 0.0
      %662 = vmatprep.subr.mxu0 0.0
      %663 = vmatpush2.msra.mxu0 0.0
      %664 = vmatprep.subr.mxu0 0.0
      %665 = vmatpush2.msra.mxu0 0.0
      %666 = vmatprep.subr.mxu0 0.0
      %667 = vmatpush2.msra.mxu0 0.0
      %668 = vmatprep.subr.mxu0 0.0
      %669 = vmatpush2.msra.mxu0 0.0
      %670 = vmatprep.subr.mxu0 0.0
      %671 = vmatpush2.msra.mxu0 0.0
      %672 = vmatprep.subr.mxu0 0.0
      %673 = vmatpush2.msra.mxu0 0.0
      %674 = vmatprep.subr.mxu0 0.0
      %675 = vmatpush2.msra.mxu0 0.0
      %676 = vmatprep.subr.mxu0 0.0
      %677 = vmatpush2.msra.mxu0 0.0
      %678 = vmatprep.subr.mxu0 0.0
      %679 = vmatpush2.msra.mxu0 0.0
      %680 = vmatprep.subr.mxu0 0.0
      %681 = vmatpush2.msra.mxu0 0.0
      %682 = vmatprep.subr.mxu0 0.0
      %683 = vmatpush2.msra.mxu0 0.0
      %684 = vmatprep.subr.mxu0 0.0
      %685 = vmatpush2.msra.mxu0 0.0
      %686 = vmatprep.subr.mxu0 0.0
      %687 = vmatpush2.msra.mxu0 0.0
      %688 = vmatprep.subr.mxu0 0.0
      %689 = vmatpush2.msra.mxu0 0.0
      %690 = vmatprep.mubr.f32.mxu0 0.0
      %691 = vmatmul.mubr.f32.gmra.mxu0 %v624
      %v692 = vpop.f32.mrf.mxu0
      %v693 = vadd.f32 0.0, %v692
      %v694 = vpop.f32.mrf.mxu0
      %v695 = vadd.f32 0.0, %v694
      %696 = vdwg.mxu0
      %697 = vst [vmem:[%s224] sm:$0xff] %v693
      %698 = vst [vmem:[%s224 + $0x8] sm:$0xff] %v695
      %p699 = scmp.lt.s32.totalorder %s16, 1
      %s700 = scalar_select %p699, %s16, 1
      %s701 = smul.addr %s700, 2
      %s702 = smul.addr %s701, 8
      %s703 = scalar_lea.vmem %s5, %s702
      // Predicated region
      $region41: #{bisenet_output.1} parent=39 // pred_check
        %p704 = pneg %p144
      $region42: #{bisenet_output.1} parent=39 // pred_check_branch
        %706 = sbr.rel (%p704) target = $region44
      $region43: #{bisenet_output.1} parent=39 // pred_region
        _
      $region44: #{bisenet_output.1} parent=39 // pred_fallthru
        _
    $region40: #{bisenet_output.1} parent=5 // pred_fallthru
      _
    %p707 = scmp.le.s32.totalorder 2, %s11
    // Predicated region
    $region45: #{bisenet_output.1} parent=5 // pred_check
      %p708 = pneg %p707
    $region46: #{bisenet_output.1} parent=5 // pred_check_branch
      %710 = sbr.rel (%p708) target = $region48
    $region47: #{bisenet_output.1} parent=5 // pred_region
      %s711 = ssub.s32 %s11, 2
      // Predicated region
      $region49: #{bisenet_output.1} parent=47 // pred_check
        %p712 = pneg %p150
      $region50: #{bisenet_output.1} parent=47 // pred_check_branch
        %714 = sbr.rel (%p712) target = $region52
      $region51: #{bisenet_output.1} parent=47 // pred_region
        %p715 = scmp.lt.s32.totalorder %s17, 1
        %s716 = scalar_select %p715, %s17, 1
        %s717 = smul.addr %s716, 2
        %s718 = smul.addr %s717, 8
        %s719 = scalar_lea.vmem %s5, %s718
      $region52: #{bisenet_output.1} parent=47 // pred_fallthru
        _
    $region48: #{bisenet_output.1} parent=5 // pred_fallthru
      _
  $region6: #{bisenet_output.1} parent=0 // loop_footer
    %s15 = sadd.s32 1, %s11
  $region7: #{bisenet_output.1} parent=0 // loop_footer_branch
    %10 = sbr.rel target = $region3
  $region8: #{bisenet_output.1} parent=0 // loop_exit
    _

</llo_original>
